<compile_context>
chip_gen: v5e
topology: v5e:2x2
jax: 0.10.0
libtpu: 0.0.40
codegen_flags: <defaults>
</compile_context>

<pallas_src>
import jax
import jax.numpy as jnp
from jax.experimental import pallas as pl
from jax.experimental.pallas import tpu as pltpu

IN_FEATURES = 32       # stands in for data.shape[1] (unknown at authoring time)
HIDDEN = 180
OUT_FEATURES = 52

# Padded ("lane-dense") sizes used inside the kernel.
HIDDEN_P = 256         # 180 -> 256: no ragged lanes on the h tile / fc2 K dim
OUT_P = 128            # 52  -> 128: unmasked vst output stores


def _round_up(n, m):
    return ((n + m - 1) // m) * m


def _mlp_kernel(x_ref, w1_ref, b1_ref, w2_ref, b2_ref, o_ref):
    # fc1: (TB, IN) bf16 @ (IN, HIDDEN_P) bf16 -> f32 accumulate on the MXU.
    h = jnp.dot(x_ref[...], w1_ref[...], preferred_element_type=jnp.float32)
    # bias + ReLU in f32 on the VPU (works on all generations, incl. v5e).
    h = jnp.maximum(h + b1_ref[...], 0.0)
    # fc2: cast activations to bf16 for the MXU, accumulate in f32.
    y = jnp.dot(h.astype(w2_ref.dtype), w2_ref[...],
                preferred_element_type=jnp.float32)
    o_ref[...] = (y + b2_ref[...]).astype(o_ref.dtype)


def net_forward(x, fc1_w, fc1_b, fc2_w, fc2_b, *, block_b=512):
    """x: (B, IN) f32.  Params in PyTorch nn.Linear layout:
    fc1_w: (HIDDEN, IN), fc1_b: (HIDDEN,), fc2_w: (OUT, HIDDEN), fc2_b: (OUT,).
    Returns (B, OUT_FEATURES) f32."""
    B, in_f = x.shape
    hid = fc1_w.shape[0]
    out_f = fc2_w.shape[0]

    # --- glue: transpose to (in, out), zero-pad to lane-dense sizes, cast ---
    w1 = jnp.zeros((in_f, HIDDEN_P), jnp.float32).at[:, :hid].set(fc1_w.T)
    b1 = jnp.zeros((1, HIDDEN_P), jnp.float32).at[:, :hid].set(fc1_b)
    w2 = jnp.zeros((HIDDEN_P, OUT_P), jnp.float32).at[:hid, :out_f].set(fc2_w.T)
    b2 = jnp.zeros((1, OUT_P), jnp.float32).at[:, :out_f].set(fc2_b)

    x_bf = x.astype(jnp.bfloat16)
    w1_bf = w1.astype(jnp.bfloat16)
    w2_bf = w2.astype(jnp.bfloat16)

    # --- batch tiling: TB multiple of 16 sublanes (bf16 packing), pad B ---
    tb = min(block_b, _round_up(max(B, 1), 16))
    bp = _round_up(B, tb)
    if bp != B:
        x_bf = jnp.pad(x_bf, ((0, bp - B), (0, 0)))
    grid = (bp // tb,)

    # VMEM budget from the actual double-buffered footprint (+ headroom).
    per_step = (tb * in_f * 2            # x tile (bf16)
                + tb * OUT_P * 4         # out tile (f32)
                + in_f * HIDDEN_P * 2    # w1 (bf16)
                + HIDDEN_P * 4           # b1 (f32)
                + HIDDEN_P * OUT_P * 2   # w2 (bf16)
                + OUT_P * 4)             # b2 (f32)
    vmem_bytes = min(128 << 20, max(2 * per_step + (6 << 20), 8 << 20))

    out_padded = pl.pallas_call(
        _mlp_kernel,
        out_shape=jax.ShapeDtypeStruct((bp, OUT_P), jnp.float32),
        grid=grid,
        in_specs=[
            pl.BlockSpec((tb, in_f), lambda i: (i, 0)),        # x: batch-tiled
            pl.BlockSpec((in_f, HIDDEN_P), lambda i: (0, 0)),  # weights resident
            pl.BlockSpec((1, HIDDEN_P), lambda i: (0, 0)),
            pl.BlockSpec((HIDDEN_P, OUT_P), lambda i: (0, 0)),
            pl.BlockSpec((1, OUT_P), lambda i: (0, 0)),
        ],
        out_specs=pl.BlockSpec((tb, OUT_P), lambda i: (i, 0)),
        compiler_params=pltpu.CompilerParams(
            dimension_semantics=("parallel",),   # v7x: 2 TCs share the batch tiles
            vmem_limit_bytes=vmem_bytes,
        ),
    )(x_bf, w1_bf, b1, w2_bf, b2)

    # Slice away batch padding and the zero-padded output columns.
    return out_padded[:B, :out_f]


def init_params(key):
    """Deterministic synthetic params matching nn.Linear shapes:
    fc1.weight: (180, IN), fc1.bias: (180,); fc2.weight: (52, 180), fc2.bias: (52,)."""
    k1, k2, k3, k4 = jax.random.split(key, 4)
    bound1 = 1.0 / (IN_FEATURES ** 0.5)
    bound2 = 1.0 / (HIDDEN ** 0.5)
    fc1_w = jax.random.uniform(k1, (HIDDEN, IN_FEATURES), jnp.float32, -bound1, bound1)
    fc1_b = jax.random.uniform(k2, (HIDDEN,), jnp.float32, -bound1, bound1)
    fc2_w = jax.random.uniform(k3, (OUT_FEATURES, HIDDEN), jnp.float32, -bound2, bound2)
    fc2_b = jax.random.uniform(k4, (OUT_FEATURES,), jnp.float32, -bound2, bound2)
    return fc1_w, fc1_b, fc2_w, fc2_b


if __name__ == "__main__":
    key = jax.random.PRNGKey(0)
    kx, kp = jax.random.split(key)

    B = 64
    x = jax.random.normal(kx, (B, IN_FEATURES), jnp.float32)
    fc1_w, fc1_b, fc2_w, fc2_b = init_params(kp)

    out = jax.block_until_ready(net_forward(x, fc1_w, fc1_b, fc2_w, fc2_b))

    # Reference with the same bf16 input/weight quantization (f32 accumulation),
    # matching the original forward's math modulo the bf16 cast.
    q = lambda a: a.astype(jnp.bfloat16).astype(jnp.float32)
    h_ref = jnp.maximum(q(x) @ q(fc1_w.T) + fc1_b[None, :], 0.0)
    ref = q(h_ref) @ q(fc2_w.T) + fc2_b[None, :]

    assert out.shape == (B, OUT_FEATURES)
    assert jnp.allclose(out, ref, atol=2e-3, rtol=2e-3), float(jnp.max(jnp.abs(out - ref)))

    print("KERNEL_OK")
</pallas_src>

<mosaic_0001>
module attributes {stable_mosaic.version = 11 : i64} {
  func.func @_mlp_kernel(%arg0: i32, %arg1: memref<64x32xbf16, #tpu.memory_space<vmem>>, %arg2: memref<32x256xbf16, #tpu.memory_space<vmem>>, %arg3: memref<1x256xf32, #tpu.memory_space<vmem>>, %arg4: memref<256x128xbf16, #tpu.memory_space<vmem>>, %arg5: memref<1x128xf32, #tpu.memory_space<vmem>>, %arg6: memref<64x128xf32, #tpu.memory_space<vmem>>) attributes {dimension_semantics = [#tpu.dimension_semantics<parallel>], iteration_bounds = array<i64: 1>, scalar_prefetch = 0 : i64, scratch_operands = 0 : i64, tpu.core_type = #tpu.core_type<tc>, window_params = [{transform_indices = @transform_0, window_bounds = array<i64: 64, 32>}, {pipeline_mode = #tpu.pipeline_mode<synchronous>, transform_indices = @transform_1, window_bounds = array<i64: 32, 256>}, {pipeline_mode = #tpu.pipeline_mode<synchronous>, transform_indices = @transform_2, window_bounds = array<i64: 1, 256>}, {pipeline_mode = #tpu.pipeline_mode<synchronous>, transform_indices = @transform_3, window_bounds = array<i64: 256, 128>}, {pipeline_mode = #tpu.pipeline_mode<synchronous>, transform_indices = @transform_4, window_bounds = array<i64: 1, 128>}, {transform_indices = @transform_5, window_bounds = array<i64: 64, 128>}]} {
    %c0 = arith.constant 0 : index
    %c0_0 = arith.constant 0 : index
    %0 = vector.load %arg1[%c0, %c0_0] : memref<64x32xbf16, #tpu.memory_space<vmem>>, vector<64x32xbf16>
    %c0_1 = arith.constant 0 : index
    %c0_2 = arith.constant 0 : index
    %1 = vector.load %arg2[%c0_1, %c0_2] : memref<32x256xbf16, #tpu.memory_space<vmem>>, vector<32x256xbf16>
    %cst = arith.constant dense<0.000000e+00> : vector<64x256xf32>
    %2 = tpu.matmul %0, %1, %cst {dimension_numbers = #tpu.dot_dimension_numbers<[1], [0], [0], [1], [0, 0, 1, 1], [], []>} : vector<64x32xbf16>, vector<32x256xbf16>, vector<64x256xf32> -> vector<64x256xf32>
    %c0_3 = arith.constant 0 : index
    %c0_4 = arith.constant 0 : index
    %3 = vector.load %arg3[%c0_3, %c0_4] : memref<1x256xf32, #tpu.memory_space<vmem>>, vector<1x256xf32>
    %4 = vector.broadcast %3 : vector<1x256xf32> to vector<64x256xf32>
    %5 = arith.addf %2, %4 : vector<64x256xf32>
    %cst_5 = arith.constant 0.000000e+00 : f32
    %6 = vector.broadcast %cst_5 : f32 to vector<64x256xf32>
    %7 = arith.maximumf %5, %6 : vector<64x256xf32>
    %8 = arith.truncf %7 : vector<64x256xf32> to vector<64x256xbf16>
    %c0_6 = arith.constant 0 : index
    %c0_7 = arith.constant 0 : index
    %9 = vector.load %arg4[%c0_6, %c0_7] : memref<256x128xbf16, #tpu.memory_space<vmem>>, vector<256x128xbf16>
    %cst_8 = arith.constant dense<0.000000e+00> : vector<64x128xf32>
    %10 = tpu.matmul %8, %9, %cst_8 {dimension_numbers = #tpu.dot_dimension_numbers<[1], [0], [0], [1], [0, 0, 1, 1], [], []>} : vector<64x256xbf16>, vector<256x128xbf16>, vector<64x128xf32> -> vector<64x128xf32>
    %c0_9 = arith.constant 0 : index
    %c0_10 = arith.constant 0 : index
    %11 = vector.load %arg5[%c0_9, %c0_10] : memref<1x128xf32, #tpu.memory_space<vmem>>, vector<1x128xf32>
    %12 = vector.broadcast %11 : vector<1x128xf32> to vector<64x128xf32>
    %13 = arith.addf %10, %12 : vector<64x128xf32>
    %c0_11 = arith.constant 0 : index
    %c0_12 = arith.constant 0 : index
    %14 = vector.load %arg6[%c0_11, %c0_12] : memref<64x128xf32, #tpu.memory_space<vmem>>, vector<64x128xf32>
    tpu.vector_store %arg6[%c0_11, %c0_12], %13 {strides = array<i32>} : memref<64x128xf32, #tpu.memory_space<vmem>>, vector<64x128xf32>,
    return
  }
  func.func @transform_0(%arg0: i32) -> (i32, i32) {
    %c0_i32 = arith.constant 0 : i32
    %c0_i32_0 = arith.constant 0 : i32
    return %arg0, %c0_i32 : i32, i32
  }
  func.func @transform_1(%arg0: i32) -> (i32, i32) {
    %c0_i32 = arith.constant 0 : i32
    %c0_i32_0 = arith.constant 0 : i32
    %c0_i32_1 = arith.constant 0 : i32
    return %c0_i32, %c0_i32_0 : i32, i32
  }
  func.func @transform_2(%arg0: i32) -> (i32, i32) {
    %c0_i32 = arith.constant 0 : i32
    %c0_i32_0 = arith.constant 0 : i32
    %c0_i32_1 = arith.constant 0 : i32
    return %c0_i32, %c0_i32_0 : i32, i32
  }
  func.func @transform_3(%arg0: i32) -> (i32, i32) {
    %c0_i32 = arith.constant 0 : i32
    %c0_i32_0 = arith.constant 0 : i32
    %c0_i32_1 = arith.constant 0 : i32
    return %c0_i32, %c0_i32_0 : i32, i32
  }
  func.func @transform_4(%arg0: i32) -> (i32, i32) {
    %c0_i32 = arith.constant 0 : i32
    %c0_i32_0 = arith.constant 0 : i32
    %c0_i32_1 = arith.constant 0 : i32
    return %c0_i32, %c0_i32_0 : i32, i32
  }
  func.func @transform_5(%arg0: i32) -> (i32, i32) {
    %c0_i32 = arith.constant 0 : i32
    %c0_i32_0 = arith.constant 0 : i32
    return %arg0, %c0_i32 : i32, i32
  }
}

</mosaic_0001>

<llo_original>
// kernel: tpu_custom_call.1
$region0: #{tpu_custom_call.1}
  #allocation0 [shape = 'u32[]', space=smem, size = 0x4, offset = 0x4, fixed_abs, tag = 'smem constant byte address 0x4 - core index']
  #allocation1 [shape = 'u32[72,128]{1,0:T(1,128)}', space=vmem, size = 0x9000, scoped, tag = 'internal scratch']
  %s0 = inlined_call_operand.vmem [shape: bf16[64,32], index: 0, kind: input, shape index: {}]
  %s1 = inlined_call_operand.vmem [shape: bf16[32,256], index: 1, kind: input, shape index: {}]
  %s2 = inlined_call_operand.vmem [shape: f32[1,256], index: 2, kind: input, shape index: {}]
  %s3 = inlined_call_operand.hbm [shape: bf16[256,128], index: 3, kind: input, shape index: {}]
  %s4 = inlined_call_operand.vmem [shape: f32[1,128], index: 4, kind: input, shape index: {}]
  %s5 = inlined_call_operand.hbm [shape: f32[64,128], index: 5, kind: output, shape index: {}]
  %s6 = sld [smem:[#allocation0]]
  $region34: #{tpu_custom_call.1} parent=0
    _
  %s8 = ssub.s32 1, %s6
  %s9 = scalar_select 0, %s8, %s6
  $region1: #{tpu_custom_call.1} parent=0
    #allocation2 [shape = 'u8[65536]{0}', space=vmem, size = 0x10000, scoped, tag = 'input window, operand 3, single buffered']
    #allocation3 [shape = 's32[1]{0}', space=sflag, size = 0x4, scoped, tag = 'scoped memory for tpu_custom_call.1']
    #allocation4 [shape = 's32[1]{0}', space=sflag, size = 0x4, scoped, tag = 'scoped memory for tpu_custom_call.1']
    #allocation5 [shape = 'u8[32768]{0}', space=vmem, size = 0x8000, scoped, tag = 'output window, operand 0, single buffered']
    %10 = vsyncpa [#allocation3], 0
    %11 = vsyncpa [#allocation4], 0
    // Predicated region
    $region2: #{tpu_custom_call.1} parent=1 // pred_check
      _
    $region3: #{tpu_custom_call.1} parent=1 // pred_check_branch
      %13 = sbr.rel (0) target = $region5
    $region4: #{tpu_custom_call.1} parent=1 // pred_region
      _
    $region5: #{tpu_custom_call.1} parent=1 // pred_fallthru
      _
    // Predicated region
    $region6: #{tpu_custom_call.1} parent=1 // pred_check
      _
    $region7: #{tpu_custom_call.1} parent=1 // pred_check_branch
      %15 = sbr.rel (0) target = $region9
    $region8: #{tpu_custom_call.1} parent=1 // pred_region
      _
    $region9: #{tpu_custom_call.1} parent=1 // pred_fallthru
      _
    // Predicated region
    $region10: #{tpu_custom_call.1} parent=1 // pred_check
      _
    $region11: #{tpu_custom_call.1} parent=1 // pred_check_branch
      %17 = sbr.rel (0) target = $region13
    $region12: #{tpu_custom_call.1} parent=1 // pred_region
      _
    $region13: #{tpu_custom_call.1} parent=1 // pred_fallthru
      _
    // Predicated region
    $region14: #{tpu_custom_call.1} parent=1 // pred_check
      _
    $region15: #{tpu_custom_call.1} parent=1 // pred_check_branch
      %19 = sbr.rel (0) target = $region17
    $region16: #{tpu_custom_call.1} parent=1 // pred_region
      %21 = vsyncadd [#allocation3], 0
      %s22 = sshll.u32 %s3, 4
      %s23 = int_to_ptr.hbm [resolvable:$true] %s22
      %s24 = sshll.u32 [#allocation2], 4
      %s25 = int_to_ptr.vmem [resolvable:$true] %s24
      %30 = dma.hbm_to_vmem [thread:$0]  %s23, 2048, %s25, [#allocation3], 64, 64, 4
    $region17: #{tpu_custom_call.1} parent=1 // pred_fallthru
      _
    // Predicated region
    $region18: #{tpu_custom_call.1} parent=1 // pred_check
      _
    $region19: #{tpu_custom_call.1} parent=1 // pred_check_branch
      %32 = sbr.rel (0) target = $region21
    $region20: #{tpu_custom_call.1} parent=1 // pred_region
      _
    $region21: #{tpu_custom_call.1} parent=1 // pred_fallthru
      _
    // Predicated region
    $region22: #{tpu_custom_call.1} parent=1 // pred_check
      _
    $region23: #{tpu_custom_call.1} parent=1 // pred_check_branch
      %34 = sbr.rel (0) target = $region25
    $region24: #{tpu_custom_call.1} parent=1 // pred_region
      %36 = dma.done [#allocation3], 2048
    $region25: #{tpu_custom_call.1} parent=1 // pred_fallthru
      _
    %v38 = vld [vmem:[%s0] sm:$0xf]
    %v39 = vld [vmem:[%s0 + $0x4] sm:$0xf]
    %v40 = vld [vmem:[%s0 + $0x8] sm:$0xf]
    %v41 = vld [vmem:[%s0 + $0xc] sm:$0xf]
    %v42 = vld [vmem:[%s0 + $0x10] sm:$0xf]
    %v43 = vld [vmem:[%s0 + $0x14] sm:$0xf]
    %v44 = vld [vmem:[%s0 + $0x18] sm:$0xf]
    %v45 = vld [vmem:[%s0 + $0x1c] sm:$0xf]
    %v46 = vld [vmem:[%s1] sm:$0xff]
    %v47 = vld [vmem:[%s1 + $0x8] sm:$0xff]
    %v48 = vld [vmem:[%s1 + $0x10] sm:$0xff]
    %v49 = vld [vmem:[%s1 + $0x18] sm:$0xff]
    %v50 = vld [vmem:[%s2] sm:$0x3]
    %v52 = vperm.slane %v50, 0
    %v53 = vperm.slane %v50, 1
    %v64 = vunpack.c.l.b16 %v38
    %v65 = vunpack.c.l.b16 %v39
    %v66 = vunpack.c.l.b16 %v40
    %v67 = vunpack.c.l.b16 %v41
    %v68 = vunpack.c.l.b16 %v42
    %v69 = vunpack.c.l.b16 %v43
    %v70 = vunpack.c.l.b16 %v44
    %v71 = vunpack.c.l.b16 %v45
    %v72 = vpack.c.b16 %v65, %v64
    %v73 = vpack.c.b16 %v67, %v66
    %v74 = vpack.c.b16 %v69, %v68
    %v75 = vpack.c.b16 %v71, %v70
    %v80 = vunpack.c.l.b16 %v46
    %v81 = vunpack.c.h.b16 %v46
    %v82 = vunpack.c.l.b16 %v47
    %v83 = vunpack.c.h.b16 %v47
    %v84 = vunpack.c.l.b16 %v48
    %v85 = vunpack.c.h.b16 %v48
    %v86 = vunpack.c.l.b16 %v49
    %v87 = vunpack.c.h.b16 %v49
    %v88 = vpack.c.b16 %v82, %v80
    %v89 = vpack.c.b16 %v83, %v81
    %v90 = vpack.c.b16 %v86, %v84
    %v91 = vpack.c.b16 %v87, %v85
    %vm96 = vcmask 261120
    %v98 = vsel %vm96, %v72, 0
    %v101 = vsel %vm96, %v73, 0
    %v104 = vsel %vm96, %v74, 0
    %v107 = vsel %vm96, %v75, 0
    %109 = vmatpush.bf16.msra.mxu0 0
    %110 = vmatpush.bf16.msra.mxu0 0
    %111 = vmatpush.bf16.msra.mxu0 0
    %112 = vmatpush.bf16.msra.mxu0 0
    %113 = vmatpush.bf16.msra.mxu0 0
    %114 = vmatpush.bf16.msra.mxu0 0
    %115 = vmatpush.bf16.msra.mxu0 %v90
    %116 = vmatpush.bf16.msra.mxu0 %v88
    %117 = vmatmul.bf16.gmra.mxu0 %v98
    %v118 = vpop.f32.mrf.mxu0
    %v119 = vadd.f32 %v52, %v118
    %v120 = vpop.f32.mrf.mxu0
    %v121 = vadd.f32 %v52, %v120
    %122 = vmatmul.bf16.gmra.mxu0 %v101
    %v123 = vpop.f32.mrf.mxu0
    %v124 = vadd.f32 %v52, %v123
    %v125 = vpop.f32.mrf.mxu0
    %v126 = vadd.f32 %v52, %v125
    %127 = vmatmul.bf16.gmra.mxu0 %v104
    %v128 = vpop.f32.mrf.mxu0
    %v129 = vadd.f32 %v52, %v128
    %v130 = vpop.f32.mrf.mxu0
    %v131 = vadd.f32 %v52, %v130
    %132 = vmatmul.bf16.gmra.mxu0 %v107
    %v133 = vpop.f32.mrf.mxu0
    %v134 = vadd.f32 %v52, %v133
    %v135 = vpop.f32.mrf.mxu0
    %v136 = vadd.f32 %v52, %v135
    %137 = vdwg.mxu0
    %138 = vmatpush.bf16.msra.mxu0 0
    %139 = vmatpush.bf16.msra.mxu0 0
    %140 = vmatpush.bf16.msra.mxu0 0
    %141 = vmatpush.bf16.msra.mxu0 0
    %142 = vmatpush.bf16.msra.mxu0 0
    %143 = vmatpush.bf16.msra.mxu0 0
    %144 = vmatpush.bf16.msra.mxu0 %v91
    %145 = vmatpush.bf16.msra.mxu0 %v89
    %146 = vmatmul.bf16.gmra.mxu0 %v98
    %v147 = vpop.f32.mrf.mxu0
    %v148 = vadd.f32 %v53, %v147
    %v149 = vpop.f32.mrf.mxu0
    %v150 = vadd.f32 %v53, %v149
    %151 = vmatmul.bf16.gmra.mxu0 %v101
    %v152 = vpop.f32.mrf.mxu0
    %v153 = vadd.f32 %v53, %v152
    %v154 = vpop.f32.mrf.mxu0
    %v155 = vadd.f32 %v53, %v154
    %156 = vmatmul.bf16.gmra.mxu0 %v104
    %v157 = vpop.f32.mrf.mxu0
    %v158 = vadd.f32 %v53, %v157
    %v159 = vpop.f32.mrf.mxu0
    %v160 = vadd.f32 %v53, %v159
    %161 = vmatmul.bf16.gmra.mxu0 %v107
    %v162 = vpop.f32.mrf.mxu0
    %v163 = vadd.f32 %v53, %v162
    %v164 = vpop.f32.mrf.mxu0
    %v165 = vadd.f32 %v53, %v164
    %166 = vdwg.mxu0
    %v167 = vmax.f32 %v119, 0.0
    %v168 = vmax.f32 %v148, 0.0
    %v169 = vmax.f32 %v121, 0.0
    %v170 = vmax.f32 %v150, 0.0
    %v171 = vmax.f32 %v124, 0.0
    %v172 = vmax.f32 %v153, 0.0
    %v173 = vmax.f32 %v126, 0.0
    %v174 = vmax.f32 %v155, 0.0
    %v175 = vmax.f32 %v129, 0.0
    %v176 = vmax.f32 %v158, 0.0
    %v177 = vmax.f32 %v131, 0.0
    %v178 = vmax.f32 %v160, 0.0
    %v179 = vmax.f32 %v134, 0.0
    %v180 = vmax.f32 %v163, 0.0
    %v181 = vmax.f32 %v136, 0.0
    %v182 = vmax.f32 %v165, 0.0
    %v183 = vpack.c.bf16 %v169, %v167
    %v184 = vpack.c.bf16 %v170, %v168
    %v185 = vpack.c.bf16 %v173, %v171
    %v186 = vpack.c.bf16 %v174, %v172
    %v187 = vpack.c.bf16 %v177, %v175
    %v188 = vpack.c.bf16 %v178, %v176
    %v189 = vpack.c.bf16 %v181, %v179
    %v190 = vpack.c.bf16 %v182, %v180
    %v191 = vld [vmem:[#allocation2] sm:$0xf]
    %v192 = vld [vmem:[#allocation2 + $0x4] sm:$0xf]
    %v193 = vld [vmem:[#allocation2 + $0x8] sm:$0xf]
    %v194 = vld [vmem:[#allocation2 + $0xc] sm:$0xf]
    %v195 = vld [vmem:[#allocation2 + $0x10] sm:$0xf]
    %v196 = vld [vmem:[#allocation2 + $0x14] sm:$0xf]
    %v197 = vld [vmem:[#allocation2 + $0x18] sm:$0xf]
    %v198 = vld [vmem:[#allocation2 + $0x1c] sm:$0xf]
    %v199 = vld [vmem:[#allocation2 + $0x20] sm:$0xf]
    %v200 = vld [vmem:[#allocation2 + $0x24] sm:$0xf]
    %v201 = vld [vmem:[#allocation2 + $0x28] sm:$0xf]
    %v202 = vld [vmem:[#allocation2 + $0x2c] sm:$0xf]
    %v203 = vld [vmem:[#allocation2 + $0x30] sm:$0xf]
    %v204 = vld [vmem:[#allocation2 + $0x34] sm:$0xf]
    %v205 = vld [vmem:[#allocation2 + $0x38] sm:$0xf]
    %v206 = vld [vmem:[#allocation2 + $0x3c] sm:$0xf]
    %v207 = vld [vmem:[#allocation2 + $0x40] sm:$0xf]
    %v208 = vld [vmem:[#allocation2 + $0x44] sm:$0xf]
    %v209 = vld [vmem:[#allocation2 + $0x48] sm:$0xf]
    %v210 = vld [vmem:[#allocation2 + $0x4c] sm:$0xf]
    %v211 = vld [vmem:[#allocation2 + $0x50] sm:$0xf]
    %v212 = vld [vmem:[#allocation2 + $0x54] sm:$0xf]
    %v213 = vld [vmem:[#allocation2 + $0x58] sm:$0xf]
    %v214 = vld [vmem:[#allocation2 + $0x5c] sm:$0xf]
    %v215 = vld [vmem:[#allocation2 + $0x60] sm:$0xf]
    %v216 = vld [vmem:[#allocation2 + $0x64] sm:$0xf]
    %v217 = vld [vmem:[#allocation2 + $0x68] sm:$0xf]
    %v218 = vld [vmem:[#allocation2 + $0x6c] sm:$0xf]
    %v219 = vld [vmem:[#allocation2 + $0x70] sm:$0xf]
    %v220 = vld [vmem:[#allocation2 + $0x74] sm:$0xf]
    %v221 = vld [vmem:[#allocation2 + $0x78] sm:$0xf]
    %v222 = vld [vmem:[#allocation2 + $0x7c] sm:$0xf]
    %v223 = vld [vmem:[%s4] sm:$0x1]
    %v225 = vperm.slane %v223, 0
    %v259 = vunpack.c.l.b16 %v191
    %v260 = vunpack.c.l.b16 %v192
    %v261 = vunpack.c.l.b16 %v193
    %v262 = vunpack.c.l.b16 %v194
    %v263 = vunpack.c.l.b16 %v195
    %v264 = vunpack.c.l.b16 %v196
    %v265 = vunpack.c.l.b16 %v197
    %v266 = vunpack.c.l.b16 %v198
    %v267 = vunpack.c.l.b16 %v199
    %v268 = vunpack.c.l.b16 %v200
    %v269 = vunpack.c.l.b16 %v201
    %v270 = vunpack.c.l.b16 %v202
    %v271 = vunpack.c.l.b16 %v203
    %v272 = vunpack.c.l.b16 %v204
    %v273 = vunpack.c.l.b16 %v205
    %v274 = vunpack.c.l.b16 %v206
    %v275 = vunpack.c.l.b16 %v207
    %v276 = vunpack.c.l.b16 %v208
    %v277 = vunpack.c.l.b16 %v209
    %v278 = vunpack.c.l.b16 %v210
    %v279 = vunpack.c.l.b16 %v211
    %v280 = vunpack.c.l.b16 %v212
    %v281 = vunpack.c.l.b16 %v213
    %v282 = vunpack.c.l.b16 %v214
    %v283 = vunpack.c.l.b16 %v215
    %v284 = vunpack.c.l.b16 %v216
    %v285 = vunpack.c.l.b16 %v217
    %v286 = vunpack.c.l.b16 %v218
    %v287 = vunpack.c.l.b16 %v219
    %v288 = vunpack.c.l.b16 %v220
    %v289 = vunpack.c.l.b16 %v221
    %v290 = vunpack.c.l.b16 %v222
    %v291 = vpack.c.b16 %v260, %v259
    %v292 = vpack.c.b16 %v262, %v261
    %v293 = vpack.c.b16 %v264, %v263
    %v294 = vpack.c.b16 %v266, %v265
    %v295 = vpack.c.b16 %v268, %v267
    %v296 = vpack.c.b16 %v270, %v269
    %v297 = vpack.c.b16 %v272, %v271
    %v298 = vpack.c.b16 %v274, %v273
    %v299 = vpack.c.b16 %v276, %v275
    %v300 = vpack.c.b16 %v278, %v277
    %v301 = vpack.c.b16 %v280, %v279
    %v302 = vpack.c.b16 %v282, %v281
    %v303 = vpack.c.b16 %v284, %v283
    %v304 = vpack.c.b16 %v286, %v285
    %v305 = vpack.c.b16 %v288, %v287
    %v306 = vpack.c.b16 %v290, %v289
    %323 = vmatpush.bf16.msra.mxu0 %v298
    %324 = vmatpush.bf16.msra.mxu0 %v297
    %325 = vmatpush.bf16.msra.mxu0 %v296
    %326 = vmatpush.bf16.msra.mxu0 %v295
    %327 = vmatpush.bf16.msra.mxu0 %v294
    %328 = vmatpush.bf16.msra.mxu0 %v293
    %329 = vmatpush.bf16.msra.mxu0 %v292
    %330 = vmatpush.bf16.msra.mxu0 %v291
    %331 = vmatmul.bf16.gmra.mxu0 %v183
    %v332 = vpop.f32.mrf.mxu0
    %v333 = vadd.f32 %v225, %v332
    %v334 = vpop.f32.mrf.mxu0
    %v335 = vadd.f32 %v225, %v334
    %336 = vmatmul.bf16.gmra.mxu0 %v185
    %v337 = vpop.f32.mrf.mxu0
    %v338 = vadd.f32 %v225, %v337
    %v339 = vpop.f32.mrf.mxu0
    %v340 = vadd.f32 %v225, %v339
    %341 = vmatmul.bf16.gmra.mxu0 %v187
    %v342 = vpop.f32.mrf.mxu0
    %v343 = vadd.f32 %v225, %v342
    %v344 = vpop.f32.mrf.mxu0
    %v345 = vadd.f32 %v225, %v344
    %346 = vmatmul.bf16.gmra.mxu0 %v189
    %v347 = vpop.f32.mrf.mxu0
    %v348 = vadd.f32 %v225, %v347
    %v349 = vpop.f32.mrf.mxu0
    %v350 = vadd.f32 %v225, %v349
    %351 = vdwg.mxu0
    %352 = vmatpush.bf16.msra.mxu0 %v306
    %353 = vmatpush.bf16.msra.mxu0 %v305
    %354 = vmatpush.bf16.msra.mxu0 %v304
    %355 = vmatpush.bf16.msra.mxu0 %v303
    %356 = vmatpush.bf16.msra.mxu0 %v302
    %357 = vmatpush.bf16.msra.mxu0 %v301
    %358 = vmatpush.bf16.msra.mxu0 %v300
    %359 = vmatpush.bf16.msra.mxu0 %v299
    %360 = vmatmul.bf16.gmra.mxu0 %v184
    %v361 = vpop.f32.mrf.mxu0
    %v362 = vadd.f32 %v333, %v361
    %v363 = vpop.f32.mrf.mxu0
    %v364 = vadd.f32 %v335, %v363
    %365 = vmatmul.bf16.gmra.mxu0 %v186
    %v366 = vpop.f32.mrf.mxu0
    %v367 = vadd.f32 %v338, %v366
    %v368 = vpop.f32.mrf.mxu0
    %v369 = vadd.f32 %v340, %v368
    %370 = vmatmul.bf16.gmra.mxu0 %v188
    %v371 = vpop.f32.mrf.mxu0
    %v372 = vadd.f32 %v343, %v371
    %v373 = vpop.f32.mrf.mxu0
    %v374 = vadd.f32 %v345, %v373
    %375 = vmatmul.bf16.gmra.mxu0 %v190
    %v376 = vpop.f32.mrf.mxu0
    %v377 = vadd.f32 %v348, %v376
    %v378 = vpop.f32.mrf.mxu0
    %v379 = vadd.f32 %v350, %v378
    %380 = vdwg.mxu0
    %381 = vst [vmem:[#allocation5] sm:$0xff] %v362
    %382 = vst [vmem:[#allocation5 + $0x8] sm:$0xff] %v364
    %383 = vst [vmem:[#allocation5 + $0x10] sm:$0xff] %v367
    %384 = vst [vmem:[#allocation5 + $0x18] sm:$0xff] %v369
    %385 = vst [vmem:[#allocation5 + $0x20] sm:$0xff] %v372
    %386 = vst [vmem:[#allocation5 + $0x28] sm:$0xff] %v374
    %387 = vst [vmem:[#allocation5 + $0x30] sm:$0xff] %v377
    %388 = vst [vmem:[#allocation5 + $0x38] sm:$0xff] %v379
    // Predicated region
    $region26: #{tpu_custom_call.1} parent=1 // pred_check
      _
    $region27: #{tpu_custom_call.1} parent=1 // pred_check_branch
      %390 = sbr.rel (0) target = $region29
    $region28: #{tpu_custom_call.1} parent=1 // pred_region
      %392 = vsyncadd [#allocation4], 0
      %s393 = sshll.u32 [#allocation5], 4
      %s394 = int_to_ptr.vmem [resolvable:$true] %s393
      %s395 = sshll.u32 %s5, 4
      %s396 = int_to_ptr.hbm [resolvable:$true] %s395
      %401 = dma.vmem_to_hbm [thread:$0]  %s394, 1024, %s396, [#allocation4], 128, 128, 8
    $region29: #{tpu_custom_call.1} parent=1 // pred_fallthru
      _
    // Predicated region
    $region30: #{tpu_custom_call.1} parent=1 // pred_check
      _
    $region31: #{tpu_custom_call.1} parent=1 // pred_check_branch
      %403 = sbr.rel (0) target = $region33
    $region32: #{tpu_custom_call.1} parent=1 // pred_region
      %405 = dma.done [#allocation4], 1024
    $region33: #{tpu_custom_call.1} parent=1 // pred_fallthru
      _
    %406 = vsyncpa [#allocation3], 1
    %407 = vsyncpa [#allocation4], 1

</llo_original>
